<compile_context>
chip_gen: v7x
topology: tpu7x:2x2x1
jax: 0.10.0
libtpu: 0.0.40
codegen_flags: <defaults>
</compile_context>

<pallas_src>
import math

import jax
import jax.numpy as jnp
from jax.experimental import pallas as pl
from jax.experimental.pallas import tpu as pltpu


def _round_up(a, b):
    return (a + b - 1) // b * b


def _make_linear_kernel(has_bias, use_acc_scratch, compute_dtype):
    """Build the (tm, tn) output-tile kernel; K is reduced over grid axis 2.

    Refs (in order):
      x_ref  : (tm, tk)  activations, original dtype (cast in-kernel)
      w_ref  : (tn, tk)  weight in PyTorch (out, in) layout (no HBM transpose)
      b_ref  : (1, tn)   f32 bias                       [only if has_bias]
      o_ref  : (tm, tn)  output tile
      acc_ref: (tm, tn)  f32 scratch                    [only if use_acc_scratch]
    """

    def kernel(*refs):
        if has_bias:
            x_ref, w_ref, b_ref = refs[0], refs[1], refs[2]
            rest = refs[3:]
        else:
            x_ref, w_ref = refs[0], refs[1]
            b_ref = None
            rest = refs[2:]
        if use_acc_scratch:
            o_ref, acc_ref = rest
        else:
            (o_ref,) = rest
            acc_ref = o_ref          # f32 output: accumulate in place, no scratch

        k_id = pl.program_id(2)

        @pl.when(k_id == 0)
        def _init():
            if has_bias:
                acc_ref[...] = jnp.broadcast_to(b_ref[...], acc_ref.shape)
            else:
                acc_ref[...] = jnp.zeros_like(acc_ref)

        # In-kernel bf16 cast of both operands; contraction on the *last* axis
        # of both operands == x @ W^T, so the PyTorch-layout weight feeds the
        # MXU directly.
        acc_ref[...] += jax.lax.dot_general(
            x_ref[...].astype(compute_dtype),
            w_ref[...].astype(compute_dtype),
            (((1,), (1,)), ((), ())),
            preferred_element_type=jnp.float32,
        )

        if use_acc_scratch:
            @pl.when(k_id == pl.num_programs(2) - 1)
            def _finalize():
                o_ref[...] = acc_ref[...].astype(o_ref.dtype)

    return kernel


def linear_forward(x, weight, bias=None, *,
                   tm=512, tn=512, tk=512,
                   compute_dtype=jnp.bfloat16, out_dtype=None):
    """PyTorch nn.Linear semantics: y = x @ weight.T + bias.

    x:      (..., in_features)
    weight: (out_features, in_features)   (PyTorch layout, used as-is)
    bias:   (out_features,) or None
    """
    *lead, k_in = x.shape
    n_out, k_w = weight.shape
    assert k_w == k_in, (weight.shape, x.shape)
    m = math.prod(lead)
    out_dtype = jnp.dtype(out_dtype if out_dtype is not None else x.dtype)
    has_bias = bias is not None

    # --- tile selection (8/128-aligned; lane-dense output stores) ----------
    tm_ = tm if m > tm else _round_up(m, 8)
    tn_ = tn if n_out > tn else _round_up(n_out, 128)
    tk_ = tk if k_in > tk else _round_up(k_in, 128)
    # Small-M (decode) shapes: keep more j blocks so a second TensorCore
    # (v7x) / megacore has independent N-tiles to work on.
    if m <= tm_ and n_out > 256 and tn_ > 256:
        tn_ = 256

    mp = _round_up(m, tm_)
    np_ = _round_up(n_out, tn_)
    kp = _round_up(k_in, tk_)

    # --- operands: no wrapper-side transpose or dtype cast ------------------
    x2 = x.reshape(m, k_in)                     # free when layout is unchanged
    w = weight                                  # (out, in) layout, original dtype
    if (mp, kp) != (m, k_in):
        x2 = jnp.pad(x2, ((0, mp - m), (0, kp - k_in)))
    if (np_, kp) != (n_out, k_in):
        w = jnp.pad(w, ((0, np_ - n_out), (0, kp - k_in)))

    in_specs = [
        pl.BlockSpec((tm_, tk_), lambda i, j, k: (i, k)),
        pl.BlockSpec((tn_, tk_), lambda i, j, k: (j, k)),
    ]
    args = [x2, w]
    if has_bias:
        b = bias.astype(jnp.float32)
        if np_ != n_out:
            b = jnp.pad(b, (0, np_ - n_out))
        args.append(b.reshape(1, np_))
        in_specs.append(pl.BlockSpec((1, tn_), lambda i, j, k: (0, j)))

    use_acc_scratch = out_dtype != jnp.float32
    scratch_shapes = ([pltpu.VMEM((tm_, tn_), jnp.float32)]
                      if use_acc_scratch else [])

    grid = (mp // tm_, np_ // tn_, kp // tk_)
    bytes_accessed = (x2.size * x2.dtype.itemsize
                      + w.size * w.dtype.itemsize
                      + (np_ * 4 if has_bias else 0)
                      + mp * np_ * out_dtype.itemsize)

    out = pl.pallas_call(
        _make_linear_kernel(has_bias, use_acc_scratch, compute_dtype),
        out_shape=jax.ShapeDtypeStruct((mp, np_), out_dtype),
        grid_spec=pltpu.PrefetchScalarGridSpec(
            num_scalar_prefetch=0,
            grid=grid,
            in_specs=in_specs,
            out_specs=pl.BlockSpec((tm_, tn_), lambda i, j, k: (i, j)),
            scratch_shapes=scratch_shapes,
        ),
        compiler_params=pltpu.CompilerParams(
            dimension_semantics=("parallel", "parallel", "arbitrary")),
        cost_estimate=pl.CostEstimate(
            flops=2 * m * n_out * k_in,
            transcendentals=0,
            bytes_accessed=bytes_accessed),
    )(*args)

    out = out[:m, :n_out]
    return out.reshape(*lead, n_out)


def xavier_uniform(key, out_features, in_features, gain=1.0):
    """torch.nn.init.xavier_uniform_ (gain('linear') == 1.0), reproduced in JAX."""
    bound = gain * math.sqrt(6.0 / (in_features + out_features))
    return jax.random.uniform(key, (out_features, in_features), jnp.float32,
                              minval=-bound, maxval=bound)


def _reference(x, weight, bias, compute_dtype=jnp.bfloat16):
    """Reference with the same bf16 operand rounding but exact f32 accumulation."""
    xr = x.astype(compute_dtype).astype(jnp.float32)
    wr = weight.astype(compute_dtype).astype(jnp.float32)
    y = jnp.einsum("...k,nk->...n", xr, wr, precision=jax.lax.Precision.HIGHEST)
    return y + bias


if __name__ == "__main__":
    BATCH, SEQ, IN_FEATURES, OUT_FEATURES = 2, 8, 32, 64

    key = jax.random.PRNGKey(0)
    kx, kw, kb, kx2, kw2, kb2 = jax.random.split(key, 6)

    # --- main case (small dims -> aligned full-extent blocks) ---------------
    x = jax.random.normal(kx, (BATCH, SEQ, IN_FEATURES), jnp.float32)
    weight = xavier_uniform(kw, OUT_FEATURES, IN_FEATURES)      # init_gain='linear'
    bias = 0.1 * jax.random.normal(kb, (OUT_FEATURES,), jnp.float32)

    y = jax.block_until_ready(linear_forward(x, weight, bias))
    assert y.shape == (BATCH, SEQ, OUT_FEATURES), y.shape
    assert bool(jnp.all(jnp.isfinite(y)))
    assert float(jnp.max(jnp.abs(y - _reference(x, weight, bias)))) < 1e-3
    y_f32 = jnp.einsum("...k,nk->...n", x, weight,
                       precision=jax.lax.Precision.HIGHEST) + bias
    assert float(jnp.max(jnp.abs(y - y_f32))) < 1e-1   # bf16-operand tolerance

    # --- ragged case: N-tiling (n>256 -> tn=256, two j blocks), M/K padding --
    x2 = jax.random.normal(kx2, (2, 7, 40), jnp.float32)
    w2 = xavier_uniform(kw2, 300, 40)
    b2 = 0.1 * jax.random.normal(kb2, (300,), jnp.float32)
    y2 = jax.block_until_ready(linear_forward(x2, w2, b2))
    assert y2.shape == (2, 7, 300), y2.shape
    assert float(jnp.max(jnp.abs(y2 - _reference(x2, w2, b2)))) < 1e-3

    # --- bias=False path (nn.Linear(bias=False)): no zero-bias DMA or add ----
    y3 = jax.block_until_ready(linear_forward(x, weight, None))
    assert float(jnp.max(jnp.abs(y3 - _reference(x, weight, 0.0)))) < 1e-3

    print("KERNEL_OK")
</pallas_src>

<mosaic_0001>
module attributes {stable_mosaic.version = 11 : i64} {
  func.func @kernel(%arg0: i32, %arg1: i32, %arg2: i32, %arg3: memref<16x128xf32, #tpu.memory_space<vmem>>, %arg4: memref<128x128xf32, #tpu.memory_space<vmem>>, %arg5: memref<1x128xf32, #tpu.memory_space<vmem>>, %arg6: memref<16x128xf32, #tpu.memory_space<vmem>>) attributes {dimension_semantics = [#tpu.dimension_semantics<parallel>, #tpu.dimension_semantics<parallel>, #tpu.dimension_semantics<arbitrary>], iteration_bounds = array<i64: 1, 1, 1>, scalar_prefetch = 0 : i64, scratch_operands = 0 : i64, tpu.core_type = #tpu.core_type<tc>, window_params = [{transform_indices = @transform_0, window_bounds = array<i64: 16, 128>}, {transform_indices = @transform_1, window_bounds = array<i64: 128, 128>}, {transform_indices = @transform_2, window_bounds = array<i64: 1, 128>}, {transform_indices = @transform_3, window_bounds = array<i64: 16, 128>}]} {
    %c0_i32 = arith.constant 0 : i32
    %0 = arith.cmpi eq, %arg2, %c0_i32 : i32
    %1 = arith.extui %0 : i1 to i32
    %c0_i32_0 = arith.constant 0 : i32
    %2 = arith.cmpi ne, %1, %c0_i32_0 : i32
    scf.if %2 {
      %c0_8 = arith.constant 0 : index
      %c0_9 = arith.constant 0 : index
      %11 = vector.load %arg5[%c0_8, %c0_9] : memref<1x128xf32, #tpu.memory_space<vmem>>, vector<1x128xf32>
      %12 = vector.shape_cast %11 : vector<1x128xf32> to vector<1x128xf32>
      %13 = vector.broadcast %12 : vector<1x128xf32> to vector<16x128xf32>
      %c0_10 = arith.constant 0 : index
      %c0_11 = arith.constant 0 : index
      %14 = vector.load %arg6[%c0_10, %c0_11] : memref<16x128xf32, #tpu.memory_space<vmem>>, vector<16x128xf32>
      tpu.vector_store %arg6[%c0_10, %c0_11], %13 {strides = array<i32>} : memref<16x128xf32, #tpu.memory_space<vmem>>, vector<16x128xf32>,
    } else {
    }
    %c0 = arith.constant 0 : index
    %c0_1 = arith.constant 0 : index
    %3 = vector.load %arg6[%c0, %c0_1] : memref<16x128xf32, #tpu.memory_space<vmem>>, vector<16x128xf32>
    %c0_2 = arith.constant 0 : index
    %c0_3 = arith.constant 0 : index
    %4 = vector.load %arg3[%c0_2, %c0_3] : memref<16x128xf32, #tpu.memory_space<vmem>>, vector<16x128xf32>
    %5 = arith.truncf %4 : vector<16x128xf32> to vector<16x128xbf16>
    %c0_4 = arith.constant 0 : index
    %c0_5 = arith.constant 0 : index
    %6 = vector.load %arg4[%c0_4, %c0_5] : memref<128x128xf32, #tpu.memory_space<vmem>>, vector<128x128xf32>
    %7 = arith.truncf %6 : vector<128x128xf32> to vector<128x128xbf16>
    %cst = arith.constant dense<0.000000e+00> : vector<16x128xf32>
    %8 = tpu.matmul %5, %7, %cst {dimension_numbers = #tpu.dot_dimension_numbers<[1], [1], [0], [0], [0, 0, 1, 0], [], []>} : vector<16x128xbf16>, vector<128x128xbf16>, vector<16x128xf32> -> vector<16x128xf32>
    %9 = arith.addf %3, %8 : vector<16x128xf32>
    %c0_6 = arith.constant 0 : index
    %c0_7 = arith.constant 0 : index
    %10 = vector.load %arg6[%c0_6, %c0_7] : memref<16x128xf32, #tpu.memory_space<vmem>>, vector<16x128xf32>
    tpu.vector_store %arg6[%c0_6, %c0_7], %9 {strides = array<i32>} : memref<16x128xf32, #tpu.memory_space<vmem>>, vector<16x128xf32>,
    return
  }
  func.func @transform_0(%arg0: i32, %arg1: i32, %arg2: i32) -> (i32, i32) {
    %c0_i32 = arith.constant 0 : i32
    return %arg0, %arg2 : i32, i32
  }
  func.func @transform_1(%arg0: i32, %arg1: i32, %arg2: i32) -> (i32, i32) {
    %c0_i32 = arith.constant 0 : i32
    return %arg1, %arg2 : i32, i32
  }
  func.func @transform_2(%arg0: i32, %arg1: i32, %arg2: i32) -> (i32, i32) {
    %c0_i32 = arith.constant 0 : i32
    %c0_i32_0 = arith.constant 0 : i32
    return %c0_i32, %arg1 : i32, i32
  }
  func.func @transform_3(%arg0: i32, %arg1: i32, %arg2: i32) -> (i32, i32) {
    %c0_i32 = arith.constant 0 : i32
    return %arg0, %arg1 : i32, i32
  }
}

</mosaic_0001>

<llo_original>
// kernel: tpu_custom_call.1
$region0: #{tpu_custom_call.1}
  #allocation0 [shape = 'u32[]', space=smem, size = 0x4, offset = 0x4, fixed_abs, tag = 'smem constant byte address 0x4 - core index']
  #allocation1 [shape = 'u32[144,128]{1,0:T(1,128)}', space=vmem, size = 0x12000, scoped, tag = 'internal scratch']
  %s0 = inlined_call_operand.hbm [shape: f32[16,128], index: 0, kind: input, shape index: {}]
  %s1 = inlined_call_operand.hbm [shape: f32[128,128], index: 1, kind: input, shape index: {}]
  %s2 = inlined_call_operand.vmem [shape: f32[1,128], index: 2, kind: input, shape index: {}]
  %s3 = inlined_call_operand.hbm [shape: f32[16,128], index: 3, kind: output, shape index: {}]
  %s4 = sld [smem:[#allocation0]]
  $region34: #{tpu_custom_call.1} parent=0
    _
  %s6 = ssub.s32 1, %s4
  %s7 = scalar_select 0, %s6, %s4
  $region1: #{tpu_custom_call.1} parent=0
    #allocation2 [shape = 'u8[8192]{0}', space=vmem, size = 0x2000, scoped, tag = 'input window, operand 0, single buffered']
    #allocation3 [shape = 's32[1]{0}', space=sflag, size = 0x4, scoped, tag = 'scoped memory for tpu_custom_call.1']
    #allocation4 [shape = 's32[1]{0}', space=sflag, size = 0x4, scoped, tag = 'scoped memory for tpu_custom_call.1']
    #allocation5 [shape = 'u8[65536]{0}', space=vmem, size = 0x10000, scoped, tag = 'input window, operand 1, single buffered']
    #allocation6 [shape = 's32[1]{0}', space=sflag, size = 0x4, scoped, tag = 'scoped memory for tpu_custom_call.1']
    #allocation7 [shape = 'u8[8192]{0}', space=vmem, size = 0x2000, scoped, tag = 'output window, operand 0, single buffered']
    %8 = vsyncpa [#allocation3], 0
    %9 = vsyncpa [#allocation6], 0
    %10 = vsyncpa [#allocation4], 0
    // Predicated region
    $region2: #{tpu_custom_call.1} parent=1 // pred_check
      _
    $region3: #{tpu_custom_call.1} parent=1 // pred_check_branch
      %12 = sbr.rel (0) target = $region5
    $region4: #{tpu_custom_call.1} parent=1 // pred_region
      %s14 = ssub.s32 256, 256
      %15 = vsyncadd [#allocation3], %s14
      %s16 = sshll.u32 [#allocation2], 4
      %s17 = int_to_ptr.vmem [resolvable:$true] %s16
      %22 = dma.hbm_to_vmem [thread:$0]  %s0, 256, %s17, [#allocation3], 128, 128, 8
    $region5: #{tpu_custom_call.1} parent=1 // pred_fallthru
      _
    // Predicated region
    $region6: #{tpu_custom_call.1} parent=1 // pred_check
      _
    $region7: #{tpu_custom_call.1} parent=1 // pred_check_branch
      %24 = sbr.rel (0) target = $region9
    $region8: #{tpu_custom_call.1} parent=1 // pred_region
      %s26 = ssub.s32 2048, 2048
      %27 = vsyncadd [#allocation6], %s26
      %s28 = sshll.u32 [#allocation5], 4
      %s29 = int_to_ptr.vmem [resolvable:$true] %s28
      %34 = dma.hbm_to_vmem [thread:$0]  %s1, 2048, %s29, [#allocation6], 128, 128, 8
    $region9: #{tpu_custom_call.1} parent=1 // pred_fallthru
      _
    // Predicated region
    $region10: #{tpu_custom_call.1} parent=1 // pred_check
      _
    $region11: #{tpu_custom_call.1} parent=1 // pred_check_branch
      %36 = sbr.rel (0) target = $region13
    $region12: #{tpu_custom_call.1} parent=1 // pred_region
      _
    $region13: #{tpu_custom_call.1} parent=1 // pred_fallthru
      _
    // Predicated region
    $region14: #{tpu_custom_call.1} parent=1 // pred_check
      _
    $region15: #{tpu_custom_call.1} parent=1 // pred_check_branch
      %38 = sbr.rel (0) target = $region17
    $region16: #{tpu_custom_call.1} parent=1 // pred_region
      %39 = dma.done [#allocation3], 256
    $region17: #{tpu_custom_call.1} parent=1 // pred_fallthru
      _
    // Predicated region
    $region18: #{tpu_custom_call.1} parent=1 // pred_check
      _
    $region19: #{tpu_custom_call.1} parent=1 // pred_check_branch
      %41 = sbr.rel (0) target = $region21
    $region20: #{tpu_custom_call.1} parent=1 // pred_region
      %42 = dma.done [#allocation6], 2048
    $region21: #{tpu_custom_call.1} parent=1 // pred_fallthru
      _
    %p44 = scmp.eq.s32.totalorder 0, 0
    // Predicated region
    $region22: #{tpu_custom_call.1} parent=1 // pred_check
      %p45 = pneg %p44
    $region23: #{tpu_custom_call.1} parent=1 // pred_check_branch
      %47 = sbr.rel (%p45) target = $region25
    $region24: #{tpu_custom_call.1} parent=1 // pred_region
      %v48 = vld [vmem:[%s2] sm:$0x1]
      %v50 = vlaneseq
      %v51 = vshrl.u32 %v50, 7
      %v52 = vsub.s32 0, %v51
      %v53 = vrot.slane %v48, %v52
      %55 = vst [vmem:[#allocation7] sm:$0xff] %v53
      %56 = vst [vmem:[#allocation7 + $0x8] sm:$0xff] %v53
    $region25: #{tpu_custom_call.1} parent=1 // pred_fallthru
      _
    %v57 = vld [vmem:[#allocation7] sm:$0xff]
    %v58 = vld [vmem:[#allocation7 + $0x8] sm:$0xff]
    %v59 = vld [vmem:[#allocation2] sm:$0xff]
    %v60 = vld [vmem:[#allocation2 + $0x8] sm:$0xff]
    %v61 = vpack.c.bf16 %v60, %v59
    %v62 = vld [vmem:[#allocation5] sm:$0xff]
    %v63 = vld [vmem:[#allocation5 + $0x8] sm:$0xff]
    %v64 = vld [vmem:[#allocation5 + $0x10] sm:$0xff]
    %v65 = vld [vmem:[#allocation5 + $0x18] sm:$0xff]
    %v66 = vld [vmem:[#allocation5 + $0x20] sm:$0xff]
    %v67 = vld [vmem:[#allocation5 + $0x28] sm:$0xff]
    %v68 = vld [vmem:[#allocation5 + $0x30] sm:$0xff]
    %v69 = vld [vmem:[#allocation5 + $0x38] sm:$0xff]
    %v70 = vld [vmem:[#allocation5 + $0x40] sm:$0xff]
    %v71 = vld [vmem:[#allocation5 + $0x48] sm:$0xff]
    %v72 = vld [vmem:[#allocation5 + $0x50] sm:$0xff]
    %v73 = vld [vmem:[#allocation5 + $0x58] sm:$0xff]
    %v74 = vld [vmem:[#allocation5 + $0x60] sm:$0xff]
    %v75 = vld [vmem:[#allocation5 + $0x68] sm:$0xff]
    %v76 = vld [vmem:[#allocation5 + $0x70] sm:$0xff]
    %v77 = vld [vmem:[#allocation5 + $0x78] sm:$0xff]
    %v78 = vpack.c.bf16 %v63, %v62
    %v79 = vpack.c.bf16 %v65, %v64
    %v80 = vpack.c.bf16 %v67, %v66
    %v81 = vpack.c.bf16 %v69, %v68
    %v82 = vpack.c.bf16 %v71, %v70
    %v83 = vpack.c.bf16 %v73, %v72
    %v84 = vpack.c.bf16 %v75, %v74
    %v85 = vpack.c.bf16 %v77, %v76
    %86 = vmatprep.subr.bf16.mxu0 0
    %87 = vmatpush1.bf16.xpose.msra.mxu0 %v78
    %88 = vmatprep.subr.bf16.mxu0 0
    %89 = vmatpush1.bf16.xpose.msra.mxu0 %v79
    %90 = vmatprep.subr.bf16.mxu0 0
    %91 = vmatpush1.bf16.xpose.msra.mxu0 %v80
    %92 = vmatprep.subr.bf16.mxu0 0
    %93 = vmatpush1.bf16.xpose.msra.mxu0 %v81
    %94 = vmatprep.subr.bf16.mxu0 0
    %95 = vmatpush1.bf16.xpose.msra.mxu0 %v82
    %96 = vmatprep.subr.bf16.mxu0 0
    %97 = vmatpush1.bf16.xpose.msra.mxu0 %v83
    %98 = vmatprep.subr.bf16.mxu0 0
    %99 = vmatpush1.bf16.xpose.msra.mxu0 %v84
    %100 = vmatprep.subr.bf16.mxu0 0
    %101 = vmatpush1.bf16.xpose.msra.mxu0 %v85
    %102 = vmatprep.subr.bf16.mxu0 0
    %103 = vmatpush1.bf16.xpose.msra.mxu0 0
    %104 = vmatprep.subr.bf16.mxu0 0
    %105 = vmatpush1.bf16.xpose.msra.mxu0 0
    %106 = vmatprep.subr.bf16.mxu0 0
    %107 = vmatpush1.bf16.xpose.msra.mxu0 0
    %108 = vmatprep.subr.bf16.mxu0 0
    %109 = vmatpush1.bf16.xpose.msra.mxu0 0
    %110 = vmatprep.subr.bf16.mxu0 0
    %111 = vmatpush1.bf16.xpose.msra.mxu0 0
    %112 = vmatprep.subr.bf16.mxu0 0
    %113 = vmatpush1.bf16.xpose.msra.mxu0 0
    %114 = vmatprep.subr.bf16.mxu0 0
    %115 = vmatpush1.bf16.xpose.msra.mxu0 0
    %116 = vmatprep.subr.bf16.mxu0 0
    %117 = vmatpush1.bf16.xpose.msra.mxu0 0
    %118 = vmatprep.mubr.bf16.mxu0 0
    %119 = vmatmul.mubr.bf16.gmra.mrb[0].mxu0 %v61
    %v120 = vpop.f32.mrb[0].mxu0
    %v121 = vadd.f32 0.0, %v120
    %v122 = vpop.f32.mrb[0].mxu0
    %v123 = vpop.f32.mrb[0].mxu0
    %v124 = vadd.f32 0.0, %v123
    %v125 = vpop.f32.mrb[0].mxu0
    %126 = vdwg.mxu0
    %v127 = vadd.f32 %v57, %v121
    %v128 = vadd.f32 %v58, %v124
    %129 = vst [vmem:[#allocation7] sm:$0xff] %v127
    %130 = vst [vmem:[#allocation7 + $0x8] sm:$0xff] %v128
    // Predicated region
    $region26: #{tpu_custom_call.1} parent=1 // pred_check
      _
    $region27: #{tpu_custom_call.1} parent=1 // pred_check_branch
      %132 = sbr.rel (0) target = $region29
    $region28: #{tpu_custom_call.1} parent=1 // pred_region
      %s134 = ssub.s32 256, 256
      %135 = vsyncadd [#allocation4], %s134
      %s136 = sshll.u32 [#allocation7], 4
      %s137 = int_to_ptr.vmem [resolvable:$true] %s136
      %142 = dma.vmem_to_hbm [thread:$0]  %s137, 256, %s3, [#allocation4], 128, 128, 8
    $region29: #{tpu_custom_call.1} parent=1 // pred_fallthru
      _
    // Predicated region
    $region30: #{tpu_custom_call.1} parent=1 // pred_check
      _
    $region31: #{tpu_custom_call.1} parent=1 // pred_check_branch
      %144 = sbr.rel (0) target = $region33
    $region32: #{tpu_custom_call.1} parent=1 // pred_region
      %145 = dma.done [#allocation4], 256
    $region33: #{tpu_custom_call.1} parent=1 // pred_fallthru
      _
    %146 = vsyncpa [#allocation3], 1
    %147 = vsyncpa [#allocation6], 1
    %148 = vsyncpa [#allocation4], 1

</llo_original>
